<compile_context>
chip_gen: v7x
topology: tpu7x:2x2x1
jax: 0.10.0
libtpu: 0.0.40
codegen_flags: <defaults>
</compile_context>

<pallas_src>
import jax
import jax.numpy as jnp
from jax.experimental import pallas as pl
from jax.experimental.pallas import tpu as pltpu


def _dma_copy_kernel(x_hbm_ref, o_hbm_ref, sem):
    # Identity forward: the abstract head defines no transformation.
    # One HBM->HBM DMA descriptor covers the whole tensor.
    cp = pltpu.make_async_copy(x_hbm_ref, o_hbm_ref, sem)
    cp.start()
    cp.wait()


def _pallas_identity_copy(x):
    """Materialize a copy of `x` with a single HBM->HBM DMA (no VMEM staging)."""
    return pl.pallas_call(
        _dma_copy_kernel,
        out_shape=jax.ShapeDtypeStruct(x.shape, x.dtype),
        in_specs=[pl.BlockSpec(memory_space=pl.ANY)],
        out_specs=pl.BlockSpec(memory_space=pl.ANY),
        scratch_shapes=[pltpu.SemaphoreType.DMA(())],
    )(x)


def visual_dialogue_head_forward(encoder_output, data=None, *, use_kernel=False):
    """Pallas implementation of VisualDialogueHead.forward.

    encoder_output: (B, S, H) array.
    data:           ignored (the abstract module never touches it).
    use_kernel:     False (default) -> zero-cost pass-through of the input,
                                       which is the true optimum for an
                                       identity forward on every TPU gen;
                    True            -> materialize a copy via a single
                                       HBM->HBM DMA kernel (scaffolding for
                                       future concrete-head compute).
    """
    if not use_kernel:
        # Optimal path for a pure identity: no HBM read, no HBM write.
        return encoder_output
    return _pallas_identity_copy(encoder_output)


if __name__ == "__main__":
    key = jax.random.PRNGKey(0)
    B, S, H = 2, 8, 128  # small shapes consistent with an encoder-output head
    encoder_output = jax.random.normal(key, (B, S, H), dtype=jnp.float32)
    data = {"dummy": jnp.zeros((B,), dtype=jnp.int32)}  # opaque, unused

    # Exercise the kernel (single-DMA copy) path once.
    out = visual_dialogue_head_forward(encoder_output, data, use_kernel=True)
    out = jax.block_until_ready(out)

    # Sanity: abstract head defines no compute => identity pass-through.
    assert out.shape == encoder_output.shape
    assert out.dtype == encoder_output.dtype
    assert bool(jnp.allclose(out, encoder_output))

    # Default (optimal) path: zero-cost alias of the input.
    out_fast = visual_dialogue_head_forward(encoder_output, data)
    out_fast = jax.block_until_ready(out_fast)
    assert bool(jnp.allclose(out_fast, encoder_output))

    print("KERNEL_OK")
</pallas_src>

<mosaic_0001>
module attributes {stable_mosaic.version = 11 : i64} {
  func.func @_dma_copy_kernel(%arg0: memref<2x8x128xf32, #tpu.memory_space<any>>, %arg1: memref<2x8x128xf32, #tpu.memory_space<any>>, %arg2: memref<!tpu.dma_semaphore, #tpu.memory_space<semaphore_mem>>) attributes {dimension_semantics = [], scalar_prefetch = 0 : i64, scratch_operands = 1 : i64, tpu.core_type = #tpu.core_type<tc>} {
    tpu.enqueue_dma source(%arg0 : memref<2x8x128xf32, #tpu.memory_space<any>>) target(%arg1 : memref<2x8x128xf32, #tpu.memory_space<any>>) target_semaphore(%arg2 : memref<!tpu.dma_semaphore, #tpu.memory_space<semaphore_mem>>)
    tpu.wait_dma2 semaphore(%arg2 : memref<!tpu.dma_semaphore, #tpu.memory_space<semaphore_mem>>) src(%arg0 : memref<2x8x128xf32, #tpu.memory_space<any>>) dst(%arg1 : memref<2x8x128xf32, #tpu.memory_space<any>>)
    return
  }
}

</mosaic_0001>

<llo_original>
// kernel: tpu_custom_call.1
$region0: #{tpu_custom_call.1}
  #allocation0 [shape = 'u32[]', space=smem, size = 0x4, offset = 0x4, fixed_abs, tag = 'smem constant byte address 0x4 - core index']
  #allocation1 [shape = 'u32[144,128]{1,0:T(1,128)}', space=vmem, size = 0x12000, scoped, tag = 'internal scratch']
  #allocation2 [shape = 's32[1]{0}', space=sflag, size = 0x4, scoped, tag = 'scratch operand']
  #allocation3 [shape = 's32[]', space=sflag, size = 0x4, offset = 0, fixed_abs, tag = 'sflag constant byte address 0x0 - dummy sync flag']
  #allocation4 [shape = 'u32[0]{0}', space=smem, size = 0, offset = 0, fixed_abs, tag = 'smem constant byte address 0x0 - null']
  %s0 = inlined_call_operand.hbm [shape: f32[2,8,128], index: 0, kind: input, shape index: {}]
  %s1 = inlined_call_operand.hbm [shape: f32[2,8,128], index: 1, kind: output, shape index: {}]
  %s2 = sld [smem:[#allocation0]]
  $region2: #{tpu_custom_call.1} parent=0
    _
  %s4 = ssub.s32 1, %s2
  %s5 = scalar_select 0, %s4, %s2
  %s7 = sshll.u32 1, 14
  %s8 = sxor.u32 4294967295, %s7
  %s11 = sshll.u32 3, 24
  %s12 = sxor.u32 4294967295, %s11
  %s13 = sand.u32 0, %s12
  %s15 = sor.u32 %s13, 0
  %18 = dma.general %s0, 256, %s1, [#allocation2], [#allocation3], [#allocation4], %s15, 0
  %s19 = smul.u32 2, 8
  %s20 = smul.u32 %s19, 1
  %s21 = sshll.u32 %s20, 4
  %22 = dma.done [#allocation2], %s21
  %23 = vsyncmov [#allocation2]
  %s24 = vpop.sfrf %23
  %p25 = scmp.eq.s32.totalorder %s24, 0
  %p26 = pneg %p25
  %28 = shalt.err (%p26)

</llo_original>
